<compile_context>
chip_gen: v6e
topology: v6e:2x2x1
jax: 0.10.0
libtpu: 0.0.40
codegen_flags: <defaults>
</compile_context>

<pallas_src>
import functools

import jax
import jax.numpy as jnp
from jax.experimental import pallas as pl
from jax.experimental.pallas import tpu as pltpu

MODES = 64
N_FFT = 128                 # irfft(..., n=128) in the PyTorch module
K_FREQ = N_FFT // 2 + 1     # 65 one-sided frequencies
EPS = 1e-5                  # BatchNorm eps (PyTorch default)


def _round_up(x, m):
    return -(-x // m) * m


# ---------------------------------------------------------------------------
# Kernels
# ---------------------------------------------------------------------------
def _branch_preacts(ri_ref, et_ref, dft_ref, w2_ref, b2_ref):
    """Pre-BN activations of both branches for one (batch-tile, channel) cell."""
    # x_low = irfft(out_ft, n=128): one bf16 MXU matmul, K = 128 exactly.
    x_low = jnp.dot(ri_ref[0], dft_ref[...],
                    preferred_element_type=jnp.float32)            # (TB, 128)
    # ConvTranspose1d on a length-1 input == (TB, F) @ (F, 128); the
    # .permute(0, 2, 1) is folded into the per-channel weight slice and the
    # bias varies along the lane (time) axis.
    x_high = jnp.dot(et_ref[...], w2_ref[0],
                     preferred_element_type=jnp.float32) + b2_ref[...]
    return x_low, x_high


def _stats_kernel(ri_ref, et_ref, dft_ref, w2_ref, b2_ref, rs_ref):
    # Phase 1 of two-phase BatchNorm: reduce along lanes FIRST, so the stats
    # path is two XLU reductions per branch and a tiny (TB, 4) store.
    x_low, x_high = _branch_preacts(ri_ref, et_ref, dft_ref, w2_ref, b2_ref)
    rs_ref[0] = jnp.concatenate(
        [jnp.sum(x_low, axis=1, keepdims=True),
         jnp.sum(x_low * x_low, axis=1, keepdims=True),
         jnp.sum(x_high, axis=1, keepdims=True),
         jnp.sum(x_high * x_high, axis=1, keepdims=True)],
        axis=1)                                                    # (TB, 4)


def _norm_kernel(ri_ref, et_ref, dft_ref, w2_ref, b2_ref, aff_ref, out_ref):
    # Phase 2: recompute the two cheap matmuls and apply the folded BN affine
    # (batch statistics already baked into scale/shift), ReLU, and the add.
    x_low, x_high = _branch_preacts(ri_ref, et_ref, dft_ref, w2_ref, b2_ref)
    aff = aff_ref[0]                                               # (1, 4)
    x_low = x_low * aff[:, 0:1] + aff[:, 1:2]
    x_high = jnp.maximum(x_high * aff[:, 2:3] + aff[:, 3:4], 0.0)
    out_ref[0] = x_low + x_high                                    # unmasked (TB,128) store


# ---------------------------------------------------------------------------
# Constant operands / VMEM budgeting
# ---------------------------------------------------------------------------
def _irfft_basis_128():
    """Stacked [cos; sin(k=1..63)] basis: (128, 128), K trimmed to 128."""
    k = jnp.arange(K_FREQ, dtype=jnp.float32)[:, None]             # (65, 1)
    t = jnp.arange(N_FFT, dtype=jnp.float32)[None, :]              # (1, 128)
    ang = 2.0 * jnp.pi * k * t / N_FFT
    edge = (k == 0) | (k == N_FFT // 2)
    w = jnp.where(edge, 1.0, 2.0)
    cmat = w * jnp.cos(ang) / N_FFT                                # (65, 128)
    # Imaginary DC / Nyquist rows are identically zero in irfft -> dropped.
    smat = -2.0 * jnp.sin(ang[1:N_FFT // 2, :]) / N_FFT            # (63, 128)
    return jnp.concatenate([cmat, smat], axis=0)                   # (128, 128)


def _padded_block_bytes(shape, dtype):
    """(8/16, 128)-tile padded VMEM bytes of one block."""
    itemsize = jnp.dtype(dtype).itemsize
    shape = tuple(shape)
    if len(shape) < 2:
        shape = (1,) + shape
    sub = max(8, 32 // itemsize)                 # 8 rows f32, 16 rows bf16
    rows = _round_up(shape[-2], sub)
    cols = _round_up(shape[-1], 128)
    lead = 1
    for d in shape[:-2]:
        lead *= d
    return lead * rows * cols * itemsize


def _vmem_limit_bytes(block_bytes_total):
    """Generation-aware VMEM limit with double-buffering headroom."""
    try:
        cap = int(pltpu.get_tpu_info().vmem_capacity_bytes)
    except Exception:                            # conservative fallback (v7x)
        cap = 64 * 1024 * 1024
    want = 4 * block_bytes_total + (8 << 20)
    return int(max(16 << 20, min(want, (cap * 3) // 4)))


# ---------------------------------------------------------------------------
# Wrapper
# ---------------------------------------------------------------------------
@functools.partial(jax.jit, static_argnames=("input_channels", "sequence_len",
                                             "final_out_channels"))
def tf_decoder_forward(f, out_ft, params, *, input_channels, sequence_len,
                       final_out_channels):
    B = f.shape[0]
    C, S, F = input_channels, sequence_len, final_out_channels
    assert S == N_FFT, "x_low + x_high requires sequence_len == 128"
    assert out_ft.shape == (B, C, K_FREQ)

    # Batch tiling: multiples of 16 rows (bf16 sublane packing on v5e).
    TB = min(256, _round_up(B, 16))
    B_pad = _round_up(B, TB)
    n_bt = B_pad // TB

    # --- channel-major operands (row order folded into the wrapper) --------
    # ri: [re(0..64) | im(1..63)] -> K = 128 exactly.
    ri = jnp.concatenate(
        [jnp.real(out_ft), jnp.imag(out_ft)[..., 1:N_FFT // 2]], axis=-1)
    ri_cm = jnp.transpose(ri, (1, 0, 2)).astype(jnp.float32)        # (C, B, 128)
    et = f[:, 2 * MODES:].astype(jnp.float32)                        # (B, F)
    if B_pad != B:
        ri_cm = jnp.pad(ri_cm, ((0, 0), (0, B_pad - B), (0, 0)))
        et = jnp.pad(et, ((0, B_pad - B), (0, 0)))
    ri_cm = ri_cm.astype(jnp.bfloat16)
    et = et.astype(jnp.bfloat16)

    dft = _irfft_basis_128().astype(jnp.bfloat16)                   # (128, 128)
    # ConvTranspose1d weight (F, S, C) -> per-channel (F, S) slices.
    w2_cm = jnp.transpose(params["convT_w"], (2, 0, 1)).astype(jnp.bfloat16)  # (C, F, S)
    bias2 = params["convT_b"].reshape(1, S).astype(jnp.float32)

    # --- BlockSpecs: 2-D parallel grid (batch_tile, channel) ---------------
    grid = (n_bt, C)
    ri_spec = pl.BlockSpec((1, TB, N_FFT), lambda t, c: (c, t, 0))
    et_spec = pl.BlockSpec((TB, F), lambda t, c: (t, 0))
    dft_spec = pl.BlockSpec((N_FFT, N_FFT), lambda t, c: (0, 0))
    w2_spec = pl.BlockSpec((1, F, S), lambda t, c: (c, 0, 0))
    b2_spec = pl.BlockSpec((1, S), lambda t, c: (0, 0))
    rs_spec = pl.BlockSpec((1, TB, 4), lambda t, c: (c, t, 0))
    aff_spec = pl.BlockSpec((1, 1, 4), lambda t, c: (c, 0, 0))
    out_spec = pl.BlockSpec((1, TB, S), lambda t, c: (c, t, 0))

    block_bytes = (_padded_block_bytes((TB, N_FFT), jnp.bfloat16)
                   + _padded_block_bytes((TB, F), jnp.bfloat16)
                   + _padded_block_bytes((N_FFT, N_FFT), jnp.bfloat16)
                   + _padded_block_bytes((F, S), jnp.bfloat16)
                   + _padded_block_bytes((1, S), jnp.float32)
                   + _padded_block_bytes((TB, 4), jnp.float32)
                   + _padded_block_bytes((1, 4), jnp.float32)
                   + _padded_block_bytes((TB, S), jnp.float32))
    compiler_params = pltpu.CompilerParams(
        dimension_semantics=("parallel", "parallel"),
        vmem_limit_bytes=_vmem_limit_bytes(block_bytes))

    # --- pass 1: per-row sums / sums-of-squares (phase 1 of BN stats) ------
    rowstats = pl.pallas_call(
        _stats_kernel,
        out_shape=jax.ShapeDtypeStruct((C, B_pad, 4), jnp.float32),
        grid=grid,
        in_specs=[ri_spec, et_spec, dft_spec, w2_spec, b2_spec],
        out_specs=rs_spec,
        compiler_params=compiler_params,
    )(ri_cm, et, dft, w2_cm, bias2)

    # --- finalize the batch statistics (C*4 scalars; padded rows excluded) -
    tot = jnp.sum(rowstats[:, :B, :], axis=1)                       # (C, 4)
    n_el = float(B * S)
    mean1 = tot[:, 0] / n_el
    var1 = tot[:, 1] / n_el - mean1 * mean1
    sc1 = params["bn1_w"] * jax.lax.rsqrt(var1 + EPS)
    sh1 = params["bn1_b"] - mean1 * sc1
    mean2 = tot[:, 2] / n_el
    var2 = tot[:, 3] / n_el - mean2 * mean2
    sc2 = params["bn2_w"] * jax.lax.rsqrt(var2 + EPS)
    sh2 = params["bn2_b"] - mean2 * sc2
    aff = jnp.stack([sc1, sh1, sc2, sh2], axis=1).reshape(C, 1, 4)
    aff = aff.astype(jnp.float32)

    # --- pass 2: normalize, ReLU, add --------------------------------------
    out_cm = pl.pallas_call(
        _norm_kernel,
        out_shape=jax.ShapeDtypeStruct((C, B_pad, S), jnp.float32),
        grid=grid,
        in_specs=[ri_spec, et_spec, dft_spec, w2_spec, b2_spec, aff_spec],
        out_specs=out_spec,
        compiler_params=compiler_params,
    )(ri_cm, et, dft, w2_cm, bias2, aff)

    return jnp.transpose(out_cm[:, :B, :], (1, 0, 2))               # (B, C, S)


# ---------------------------------------------------------------------------
# Pure-JAX reference (mirrors the PyTorch forward, training-mode BN)
# ---------------------------------------------------------------------------
def tf_decoder_reference(f, out_ft, params):
    def bn_train(x, g, b):
        m = jnp.mean(x, axis=(0, 2), keepdims=True)
        v = jnp.mean((x - m) ** 2, axis=(0, 2), keepdims=True)
        return (x - m) / jnp.sqrt(v + EPS) * g.reshape(1, -1, 1) + b.reshape(1, -1, 1)

    x_low = bn_train(jnp.fft.irfft(out_ft, n=N_FFT, axis=-1),
                     params["bn1_w"], params["bn1_b"])
    et = f[:, 2 * MODES:]
    conv = jnp.einsum("bf,fsc->bsc", et, params["convT_w"]) \
        + params["convT_b"][None, :, None]
    x_high = jax.nn.relu(bn_train(jnp.transpose(conv, (0, 2, 1)),
                                  params["bn2_w"], params["bn2_b"]))
    return x_low + x_high


if __name__ == "__main__":
    B = 2
    input_channels = 4
    sequence_len = N_FFT          # 128, required so x_low + x_high line up
    final_out_channels = 8

    key = jax.random.PRNGKey(0)
    kf, kre, kim, kw, kb = jax.random.split(key, 5)

    f = jax.random.normal(kf, (B, 2 * MODES + final_out_channels), jnp.float32)
    re = jax.random.normal(kre, (B, input_channels, K_FREQ), jnp.float32)
    im = jax.random.normal(kim, (B, input_channels, K_FREQ), jnp.float32)
    im = im.at[..., 0].set(0.0).at[..., -1].set(0.0)   # Hermitian DC/Nyquist
    out_ft = (re + 1j * im).astype(jnp.complex64)

    # Deterministic parameter init mirroring PyTorch defaults.
    bound = 1.0 / (final_out_channels * input_channels) ** 0.5
    params = {
        "convT_w": jax.random.uniform(
            kw, (final_out_channels, sequence_len, input_channels),
            jnp.float32, -bound, bound),
        "convT_b": jax.random.uniform(kb, (sequence_len,), jnp.float32,
                                      -bound, bound),
        "bn1_w": jnp.ones((input_channels,), jnp.float32),
        "bn1_b": jnp.zeros((input_channels,), jnp.float32),
        "bn2_w": jnp.ones((input_channels,), jnp.float32),
        "bn2_b": jnp.zeros((input_channels,), jnp.float32),
    }

    out = tf_decoder_forward(
        f, out_ft, params,
        input_channels=input_channels,
        sequence_len=sequence_len,
        final_out_channels=final_out_channels)
    out = jax.block_until_ready(out)

    ref = tf_decoder_reference(f, out_ft, params)
    err = float(jnp.max(jnp.abs(out - ref)))
    assert out.shape == (B, input_channels, sequence_len)
    # Tolerance dominated by bf16 MXU operands of the irfft/convT matmuls;
    # BN statistics are exact f32 sums in this version.
    assert err < 5e-2, f"max abs err {err}"
    print("KERNEL_OK")
</pallas_src>

<mosaic_0001>
module attributes {stable_mosaic.version = 11 : i64} {
  func.func @_stats_kernel(%arg0: i32, %arg1: i32, %arg2: memref<1x16x128xbf16, #tpu.memory_space<vmem>>, %arg3: memref<16x8xbf16, #tpu.memory_space<vmem>>, %arg4: memref<128x128xbf16, #tpu.memory_space<vmem>>, %arg5: memref<1x8x128xbf16, #tpu.memory_space<vmem>>, %arg6: memref<1x128xf32, #tpu.memory_space<vmem>>, %arg7: memref<1x16x4xf32, #tpu.memory_space<vmem>>) attributes {dimension_semantics = [#tpu.dimension_semantics<parallel>, #tpu.dimension_semantics<parallel>], iteration_bounds = array<i64: 1, 4>, scalar_prefetch = 0 : i64, scratch_operands = 0 : i64, tpu.core_type = #tpu.core_type<tc>, window_params = [{transform_indices = @transform_0, window_bounds = array<i64: 1, 16, 128>}, {transform_indices = @transform_1, window_bounds = array<i64: 16, 8>}, {pipeline_mode = #tpu.pipeline_mode<synchronous>, transform_indices = @transform_2, window_bounds = array<i64: 128, 128>}, {transform_indices = @transform_3, window_bounds = array<i64: 1, 8, 128>}, {pipeline_mode = #tpu.pipeline_mode<synchronous>, transform_indices = @transform_4, window_bounds = array<i64: 1, 128>}, {transform_indices = @transform_5, window_bounds = array<i64: 1, 16, 4>}]} {
    %c0 = arith.constant 0 : index
    %c0_0 = arith.constant 0 : index
    %c0_1 = arith.constant 0 : index
    %0 = vector.load %arg2[%c0, %c0_0, %c0_1] : memref<1x16x128xbf16, #tpu.memory_space<vmem>>, vector<1x16x128xbf16>
    %1 = vector.shape_cast %0 : vector<1x16x128xbf16> to vector<16x128xbf16>
    %c0_2 = arith.constant 0 : index
    %c0_3 = arith.constant 0 : index
    %2 = vector.load %arg4[%c0_2, %c0_3] : memref<128x128xbf16, #tpu.memory_space<vmem>>, vector<128x128xbf16>
    %cst = arith.constant dense<0.000000e+00> : vector<16x128xf32>
    %3 = tpu.matmul %1, %2, %cst {dimension_numbers = #tpu.dot_dimension_numbers<[1], [0], [0], [1], [0, 0, 1, 1], [], []>} : vector<16x128xbf16>, vector<128x128xbf16>, vector<16x128xf32> -> vector<16x128xf32>
    %c0_4 = arith.constant 0 : index
    %c0_5 = arith.constant 0 : index
    %4 = vector.load %arg3[%c0_4, %c0_5] : memref<16x8xbf16, #tpu.memory_space<vmem>>, vector<16x8xbf16>
    %c0_6 = arith.constant 0 : index
    %c0_7 = arith.constant 0 : index
    %c0_8 = arith.constant 0 : index
    %5 = vector.load %arg5[%c0_6, %c0_7, %c0_8] : memref<1x8x128xbf16, #tpu.memory_space<vmem>>, vector<1x8x128xbf16>
    %6 = vector.shape_cast %5 : vector<1x8x128xbf16> to vector<8x128xbf16>
    %cst_9 = arith.constant dense<0.000000e+00> : vector<16x128xf32>
    %7 = tpu.matmul %4, %6, %cst_9 {dimension_numbers = #tpu.dot_dimension_numbers<[1], [0], [0], [1], [0, 0, 1, 1], [], []>} : vector<16x8xbf16>, vector<8x128xbf16>, vector<16x128xf32> -> vector<16x128xf32>
    %c0_10 = arith.constant 0 : index
    %c0_11 = arith.constant 0 : index
    %8 = vector.load %arg6[%c0_10, %c0_11] : memref<1x128xf32, #tpu.memory_space<vmem>>, vector<1x128xf32>
    %9 = vector.broadcast %8 : vector<1x128xf32> to vector<16x128xf32>
    %10 = arith.addf %7, %9 : vector<16x128xf32>
    %cst_12 = arith.constant dense<0.000000e+00> : vector<16xf32>
    %11 = vector.multi_reduction <add>, %3, %cst_12 [1] : vector<16x128xf32> to vector<16xf32>
    %12 = vector.shape_cast %11 : vector<16xf32> to vector<16x1xf32>
    %13 = arith.mulf %3, %3 : vector<16x128xf32>
    %cst_13 = arith.constant dense<0.000000e+00> : vector<16xf32>
    %14 = vector.multi_reduction <add>, %13, %cst_13 [1] : vector<16x128xf32> to vector<16xf32>
    %15 = vector.shape_cast %14 : vector<16xf32> to vector<16x1xf32>
    %cst_14 = arith.constant dense<0.000000e+00> : vector<16xf32>
    %16 = vector.multi_reduction <add>, %10, %cst_14 [1] : vector<16x128xf32> to vector<16xf32>
    %17 = vector.shape_cast %16 : vector<16xf32> to vector<16x1xf32>
    %18 = arith.mulf %10, %10 : vector<16x128xf32>
    %cst_15 = arith.constant dense<0.000000e+00> : vector<16xf32>
    %19 = vector.multi_reduction <add>, %18, %cst_15 [1] : vector<16x128xf32> to vector<16xf32>
    %20 = vector.shape_cast %19 : vector<16xf32> to vector<16x1xf32>
    %21 = tpu.concatenate %12, %15, %17, %20 in 1 : vector<16x1xf32>, vector<16x1xf32>, vector<16x1xf32>, vector<16x1xf32> -> vector<16x4xf32>
    %c0_16 = arith.constant 0 : index
    %c0_17 = arith.constant 0 : index
    %c0_18 = arith.constant 0 : index
    %22 = vector.load %arg7[%c0_16, %c0_17, %c0_18] : memref<1x16x4xf32, #tpu.memory_space<vmem>>, vector<1x16x4xf32>
    %23 = vector.shape_cast %22 : vector<1x16x4xf32> to vector<16x4xf32>
    %24 = vector.shape_cast %21 : vector<16x4xf32> to vector<1x16x4xf32>
    tpu.vector_store %arg7[%c0_16, %c0_17, %c0_18], %24 {strides = array<i32>} : memref<1x16x4xf32, #tpu.memory_space<vmem>>, vector<1x16x4xf32>,
    return
  }
  func.func @transform_0(%arg0: i32, %arg1: i32) -> (i32, i32, i32) {
    %c0_i32 = arith.constant 0 : i32
    %c0_i32_0 = arith.constant 0 : i32
    return %arg1, %arg0, %c0_i32 : i32, i32, i32
  }
  func.func @transform_1(%arg0: i32, %arg1: i32) -> (i32, i32) {
    %c0_i32 = arith.constant 0 : i32
    %c0_i32_0 = arith.constant 0 : i32
    return %arg0, %c0_i32 : i32, i32
  }
  func.func @transform_2(%arg0: i32, %arg1: i32) -> (i32, i32) {
    %c0_i32 = arith.constant 0 : i32
    %c0_i32_0 = arith.constant 0 : i32
    %c0_i32_1 = arith.constant 0 : i32
    return %c0_i32, %c0_i32_0 : i32, i32
  }
  func.func @transform_3(%arg0: i32, %arg1: i32) -> (i32, i32, i32) {
    %c0_i32 = arith.constant 0 : i32
    %c0_i32_0 = arith.constant 0 : i32
    %c0_i32_1 = arith.constant 0 : i32
    return %arg1, %c0_i32, %c0_i32_0 : i32, i32, i32
  }
  func.func @transform_4(%arg0: i32, %arg1: i32) -> (i32, i32) {
    %c0_i32 = arith.constant 0 : i32
    %c0_i32_0 = arith.constant 0 : i32
    %c0_i32_1 = arith.constant 0 : i32
    return %c0_i32, %c0_i32_0 : i32, i32
  }
  func.func @transform_5(%arg0: i32, %arg1: i32) -> (i32, i32, i32) {
    %c0_i32 = arith.constant 0 : i32
    %c0_i32_0 = arith.constant 0 : i32
    return %arg1, %arg0, %c0_i32 : i32, i32, i32
  }
}

module attributes {stable_mosaic.version = 11 : i64} {
  func.func @_norm_kernel(%arg0: i32, %arg1: i32, %arg2: memref<1x16x128xbf16, #tpu.memory_space<vmem>>, %arg3: memref<16x8xbf16, #tpu.memory_space<vmem>>, %arg4: memref<128x128xbf16, #tpu.memory_space<vmem>>, %arg5: memref<1x8x128xbf16, #tpu.memory_space<vmem>>, %arg6: memref<1x128xf32, #tpu.memory_space<vmem>>, %arg7: memref<1x1x4xf32, #tpu.memory_space<vmem>>, %arg8: memref<1x16x128xf32, #tpu.memory_space<vmem>>) attributes {dimension_semantics = [#tpu.dimension_semantics<parallel>, #tpu.dimension_semantics<parallel>], iteration_bounds = array<i64: 1, 4>, scalar_prefetch = 0 : i64, scratch_operands = 0 : i64, tpu.core_type = #tpu.core_type<tc>, window_params = [{transform_indices = @transform_0, window_bounds = array<i64: 1, 16, 128>}, {transform_indices = @transform_1, window_bounds = array<i64: 16, 8>}, {pipeline_mode = #tpu.pipeline_mode<synchronous>, transform_indices = @transform_2, window_bounds = array<i64: 128, 128>}, {transform_indices = @transform_3, window_bounds = array<i64: 1, 8, 128>}, {pipeline_mode = #tpu.pipeline_mode<synchronous>, transform_indices = @transform_4, window_bounds = array<i64: 1, 128>}, {transform_indices = @transform_5, window_bounds = array<i64: 1, 1, 4>}, {transform_indices = @transform_6, window_bounds = array<i64: 1, 16, 128>}]} {
    %c0 = arith.constant 0 : index
    %c0_0 = arith.constant 0 : index
    %c0_1 = arith.constant 0 : index
    %0 = vector.load %arg2[%c0, %c0_0, %c0_1] : memref<1x16x128xbf16, #tpu.memory_space<vmem>>, vector<1x16x128xbf16>
    %1 = vector.shape_cast %0 : vector<1x16x128xbf16> to vector<16x128xbf16>
    %c0_2 = arith.constant 0 : index
    %c0_3 = arith.constant 0 : index
    %2 = vector.load %arg4[%c0_2, %c0_3] : memref<128x128xbf16, #tpu.memory_space<vmem>>, vector<128x128xbf16>
    %cst = arith.constant dense<0.000000e+00> : vector<16x128xf32>
    %3 = tpu.matmul %1, %2, %cst {dimension_numbers = #tpu.dot_dimension_numbers<[1], [0], [0], [1], [0, 0, 1, 1], [], []>} : vector<16x128xbf16>, vector<128x128xbf16>, vector<16x128xf32> -> vector<16x128xf32>
    %c0_4 = arith.constant 0 : index
    %c0_5 = arith.constant 0 : index
    %4 = vector.load %arg3[%c0_4, %c0_5] : memref<16x8xbf16, #tpu.memory_space<vmem>>, vector<16x8xbf16>
    %c0_6 = arith.constant 0 : index
    %c0_7 = arith.constant 0 : index
    %c0_8 = arith.constant 0 : index
    %5 = vector.load %arg5[%c0_6, %c0_7, %c0_8] : memref<1x8x128xbf16, #tpu.memory_space<vmem>>, vector<1x8x128xbf16>
    %6 = vector.shape_cast %5 : vector<1x8x128xbf16> to vector<8x128xbf16>
    %cst_9 = arith.constant dense<0.000000e+00> : vector<16x128xf32>
    %7 = tpu.matmul %4, %6, %cst_9 {dimension_numbers = #tpu.dot_dimension_numbers<[1], [0], [0], [1], [0, 0, 1, 1], [], []>} : vector<16x8xbf16>, vector<8x128xbf16>, vector<16x128xf32> -> vector<16x128xf32>
    %c0_10 = arith.constant 0 : index
    %c0_11 = arith.constant 0 : index
    %8 = vector.load %arg6[%c0_10, %c0_11] : memref<1x128xf32, #tpu.memory_space<vmem>>, vector<1x128xf32>
    %9 = vector.broadcast %8 : vector<1x128xf32> to vector<16x128xf32>
    %10 = arith.addf %7, %9 : vector<16x128xf32>
    %c0_12 = arith.constant 0 : index
    %c0_13 = arith.constant 0 : index
    %c0_14 = arith.constant 0 : index
    %11 = vector.load %arg7[%c0_12, %c0_13, %c0_14] : memref<1x1x4xf32, #tpu.memory_space<vmem>>, vector<1x1x4xf32>
    %12 = vector.shape_cast %11 : vector<1x1x4xf32> to vector<1x4xf32>
    %13 = vector.extract_strided_slice %12 {offsets = [0, 0], sizes = [1, 1], strides = [1, 1]} : vector<1x4xf32> to vector<1x1xf32>
    %14 = vector.broadcast %13 : vector<1x1xf32> to vector<16x128xf32>
    %15 = arith.mulf %3, %14 : vector<16x128xf32>
    %16 = vector.extract_strided_slice %12 {offsets = [0, 1], sizes = [1, 1], strides = [1, 1]} : vector<1x4xf32> to vector<1x1xf32>
    %17 = vector.broadcast %16 : vector<1x1xf32> to vector<16x128xf32>
    %18 = arith.addf %15, %17 : vector<16x128xf32>
    %19 = vector.extract_strided_slice %12 {offsets = [0, 2], sizes = [1, 1], strides = [1, 1]} : vector<1x4xf32> to vector<1x1xf32>
    %20 = vector.broadcast %19 : vector<1x1xf32> to vector<16x128xf32>
    %21 = arith.mulf %10, %20 : vector<16x128xf32>
    %22 = vector.extract_strided_slice %12 {offsets = [0, 3], sizes = [1, 1], strides = [1, 1]} : vector<1x4xf32> to vector<1x1xf32>
    %23 = vector.broadcast %22 : vector<1x1xf32> to vector<16x128xf32>
    %24 = arith.addf %21, %23 : vector<16x128xf32>
    %cst_15 = arith.constant 0.000000e+00 : f32
    %25 = vector.broadcast %cst_15 : f32 to vector<16x128xf32>
    %26 = arith.maximumf %24, %25 : vector<16x128xf32>
    %27 = arith.addf %18, %26 : vector<16x128xf32>
    %c0_16 = arith.constant 0 : index
    %c0_17 = arith.constant 0 : index
    %c0_18 = arith.constant 0 : index
    %28 = vector.load %arg8[%c0_16, %c0_17, %c0_18] : memref<1x16x128xf32, #tpu.memory_space<vmem>>, vector<1x16x128xf32>
    %29 = vector.shape_cast %28 : vector<1x16x128xf32> to vector<16x128xf32>
    %30 = vector.shape_cast %27 : vector<16x128xf32> to vector<1x16x128xf32>
    tpu.vector_store %arg8[%c0_16, %c0_17, %c0_18], %30 {strides = array<i32>} : memref<1x16x128xf32, #tpu.memory_space<vmem>>, vector<1x16x128xf32>,
    return
  }
  func.func @transform_0(%arg0: i32, %arg1: i32) -> (i32, i32, i32) {
    %c0_i32 = arith.constant 0 : i32
    %c0_i32_0 = arith.constant 0 : i32
    return %arg1, %arg0, %c0_i32 : i32, i32, i32
  }
  func.func @transform_1(%arg0: i32, %arg1: i32) -> (i32, i32) {
    %c0_i32 = arith.constant 0 : i32
    %c0_i32_0 = arith.constant 0 : i32
    return %arg0, %c0_i32 : i32, i32
  }
  func.func @transform_2(%arg0: i32, %arg1: i32) -> (i32, i32) {
    %c0_i32 = arith.constant 0 : i32
    %c0_i32_0 = arith.constant 0 : i32
    %c0_i32_1 = arith.constant 0 : i32
    return %c0_i32, %c0_i32_0 : i32, i32
  }
  func.func @transform_3(%arg0: i32, %arg1: i32) -> (i32, i32, i32) {
    %c0_i32 = arith.constant 0 : i32
    %c0_i32_0 = arith.constant 0 : i32
    %c0_i32_1 = arith.constant 0 : i32
    return %arg1, %c0_i32, %c0_i32_0 : i32, i32, i32
  }
  func.func @transform_4(%arg0: i32, %arg1: i32) -> (i32, i32) {
    %c0_i32 = arith.constant 0 : i32
    %c0_i32_0 = arith.constant 0 : i32
    %c0_i32_1 = arith.constant 0 : i32
    return %c0_i32, %c0_i32_0 : i32, i32
  }
  func.func @transform_5(%arg0: i32, %arg1: i32) -> (i32, i32, i32) {
    %c0_i32 = arith.constant 0 : i32
    %c0_i32_0 = arith.constant 0 : i32
    %c0_i32_1 = arith.constant 0 : i32
    return %arg1, %c0_i32, %c0_i32_0 : i32, i32, i32
  }
  func.func @transform_6(%arg0: i32, %arg1: i32) -> (i32, i32, i32) {
    %c0_i32 = arith.constant 0 : i32
    %c0_i32_0 = arith.constant 0 : i32
    return %arg1, %arg0, %c0_i32 : i32, i32, i32
  }
}

</mosaic_0001>

<llo_original>
// kernel: custom-call
$region0: #{custom-call}
  %s0 = inlined_call_operand.vmem [shape: c64[2,4,65], index: 0, kind: input, shape index: {}]
  %s1 = inlined_call_operand.vmem [shape: f32[2,4,65], index: 1, kind: output, shape index: {}]
  %v2 = vld [vmem:[%s0] sm:$0xff]
  %3 = vst [vmem:[%s1] sm:$0xff] %v2

// kernel: custom-call.1
$region0: #{custom-call.1}
  %s0 = inlined_call_operand.vmem [shape: c64[2,4,65], index: 0, kind: input, shape index: {}]
  %s1 = inlined_call_operand.vmem [shape: f32[2,4,65], index: 1, kind: output, shape index: {}]
  %s2 = scalar_lea.vmem %s0, 8
  %v3 = vld [vmem:[%s2] sm:$0xff]
  %4 = vst [vmem:[%s1] sm:$0xff] %v3

// kernel: tf_decoder_forward.3
$region0: #{tf_decoder_forward.3}
  #allocation0 [shape = 'u32[]', space=smem, size = 0x4, offset = 0x4, fixed_abs, tag = 'smem constant byte address 0x4 - core index']
  #allocation1 [shape = 'u32[144,128]{1,0:T(1,128)}', space=vmem, size = 0x12000, scoped, tag = 'internal scratch']
  %s0 = inlined_call_operand.vmem [shape: bf16[4,16,128], index: 0, kind: input, shape index: {}]
  %s1 = inlined_call_operand.vmem [shape: bf16[16,8], index: 1, kind: input, shape index: {}]
  %s2 = inlined_call_operand.vmem [shape: bf16[128,128], index: 2, kind: input, shape index: {}]
  %s3 = inlined_call_operand.vmem [shape: bf16[4,8,128], index: 3, kind: input, shape index: {}]
  %s4 = inlined_call_operand.vmem [shape: f32[1,128], index: 4, kind: input, shape index: {}]
  %s5 = inlined_call_operand.vmem [shape: f32[4,1,4], index: 5, kind: input, shape index: {}]
  %s6 = inlined_call_operand.vmem [shape: f32[4,16,128], index: 6, kind: output, shape index: {}]
  %s7 = sld [smem:[#allocation0]]
  $region57: #{tf_decoder_forward.3} parent=0
    _
  %s9 = ssub.s32 1, %s7
  %s10 = scalar_select 0, %s9, %s7
  loop: start=0, step=1, limit=6
  $region2: #{tf_decoder_forward.3} parent=0 // loop_pre_header
    _
  $region3: #{tf_decoder_forward.3} parent=0 // loop_header
    %s12 = sphi 0, %s16
    %p13 = scmp.ge.s32.totalorder %s12, 6
    %s19 = sphi 0, %s31
    %s20 = sphi 0, %s27
    %s21 = sphi 0, %s19
    %s22 = sphi 0, %s20
    %s23 = sphi 0, %s21
    %s24 = sphi 0, %s22
    %s36 = sphi 0, %s38
    %s39 = sphi 0, %s36
    %s40 = sphi 0, %s39
    %s56 = sphi 0, %s40
    %s62 = sphi 0, %s64
    %s65 = sphi 0, %s62
    %s66 = sphi 0, %s65
    %s82 = sphi 0, %s66
    %s86 = sphi 0, %s86
    %s88 = sphi 0, %s86
    %s89 = sphi 0, %s88
    %s103 = sphi 0, %s89
    %s109 = sphi 0, %s111
    %s112 = sphi 0, %s109
    %s113 = sphi 0, %s112
    %s129 = sphi 0, %s113
    %s133 = sphi 0, %s133
    %s135 = sphi 0, %s133
    %s136 = sphi 0, %s135
    %s150 = sphi 0, %s136
    %s156 = sphi 0, %s158
    %s159 = sphi 0, %s156
    %s160 = sphi 0, %s159
    %s176 = sphi 0, %s160
    %s184 = sphi 0, %s186
    %s187 = sphi 0, %s184
    %s188 = sphi 0, %s187
    %s204 = sphi 0, %s188
  $region4: #{tf_decoder_forward.3} parent=0 // loop_header_branch
    %15 = sbr.rel (%p13) target = $region8
  $region5: #{tf_decoder_forward.3} parent=0 // loop_body
    %s17 = ssub.s32 %s12, 1
    %s18 = ssub.s32 %s12, 2
    %s25 = sadd.s32 1, %s20
    %p26 = scmp.ge.s32.totalorder %s25, 4
    %s27 = scalar_select %p26, 0, %s25
    %s28 = sadd.s32 1, %s19
    %s29 = scalar_select %p26, %s28, %s19
    %p30 = scmp.ge.s32.totalorder %s29, 1
    %s31 = scalar_select %p30, 0, %s29
    %s32 = ssub.s32 %s20, %s27
    %s33 = ssub.s32 %s19, %s31
    %s34 = sor.u32 %s32, %s33
    %p35 = scmp.eq.s32.totalorder %s34, 0
    %s37 = sadd.s32 %s36, 1
    %s38 = scalar_select %p35, %s36, %s37
    %p41 = pneg %p35
    %p42 = scmp.eq.s32.totalorder %s12, 3
    %p43 = por %p41, %p42
    %p44 = scmp.ne.s32.totalorder %s36, %s39
    %p45 = scmp.eq.s32.totalorder %s12, 0
    %p46 = por %p44, %p45
    %p47 = scmp.ne.s32.totalorder %s36, %s39
    %p48 = scmp.eq.s32.totalorder %s17, 3
    %p49 = por %p47, %p48
    %p50 = scmp.ne.s32.totalorder %s39, %s40
    %p51 = scmp.eq.s32.totalorder %s17, 0
    %p52 = por %p50, %p51
    %p53 = scmp.ne.s32.totalorder %s39, %s40
    %p54 = scmp.eq.s32.totalorder %s18, 3
    %p55 = por %p53, %p54
    %p57 = scmp.ne.s32.totalorder %s40, %s56
    %p58 = scmp.eq.s32.totalorder %s18, 0
    %p59 = por %p57, %p58
    %s60 = ssub.s32 %s19, %s31
    %p61 = scmp.eq.s32.totalorder %s60, 0
    %s63 = sadd.s32 %s62, 1
    %s64 = scalar_select %p61, %s62, %s63
    %p67 = pneg %p61
    %p68 = scmp.eq.s32.totalorder %s12, 3
    %p69 = por %p67, %p68
    %p70 = scmp.ne.s32.totalorder %s62, %s65
    %p71 = scmp.eq.s32.totalorder %s12, 0
    %p72 = por %p70, %p71
    %p73 = scmp.ne.s32.totalorder %s62, %s65
    %p74 = scmp.eq.s32.totalorder %s17, 3
    %p75 = por %p73, %p74
    %p76 = scmp.ne.s32.totalorder %s65, %s66
    %p77 = scmp.eq.s32.totalorder %s17, 0
    %p78 = por %p76, %p77
    %p79 = scmp.ne.s32.totalorder %s65, %s66
    %p80 = scmp.eq.s32.totalorder %s18, 3
    %p81 = por %p79, %p80
    %p83 = scmp.ne.s32.totalorder %s66, %s82
    %p84 = scmp.eq.s32.totalorder %s18, 0
    %p85 = por %p83, %p84
    %s87 = sadd.s32 %s86, 1
    %p90 = scmp.eq.s32.totalorder %s12, 3
    %p91 = scmp.ne.s32.totalorder %s86, %s88
    %p92 = scmp.eq.s32.totalorder %s12, 0
    %p93 = por %p91, %p92
    %p94 = scmp.ne.s32.totalorder %s86, %s88
    %p95 = scmp.eq.s32.totalorder %s17, 3
    %p96 = por %p94, %p95
    %p97 = scmp.ne.s32.totalorder %s88, %s89
    %p98 = scmp.eq.s32.totalorder %s17, 0
    %p99 = por %p97, %p98
    %p100 = scmp.ne.s32.totalorder %s88, %s89
    %p101 = scmp.eq.s32.totalorder %s18, 3
    %p102 = por %p100, %p101
    %p104 = scmp.ne.s32.totalorder %s89, %s103
    %p105 = scmp.eq.s32.totalorder %s18, 0
    %p106 = por %p104, %p105
    %s107 = ssub.s32 %s20, %s27
    %p108 = scmp.eq.s32.totalorder %s107, 0
    %s110 = sadd.s32 %s109, 1
    %s111 = scalar_select %p108, %s109, %s110
    %p114 = pneg %p108
    %p115 = scmp.eq.s32.totalorder %s12, 3
    %p116 = por %p114, %p115
    %p117 = scmp.ne.s32.totalorder %s109, %s112
    %p118 = scmp.eq.s32.totalorder %s12, 0
    %p119 = por %p117, %p118
    %p120 = scmp.ne.s32.totalorder %s109, %s112
    %p121 = scmp.eq.s32.totalorder %s17, 3
    %p122 = por %p120, %p121
    %p123 = scmp.ne.s32.totalorder %s112, %s113
    %p124 = scmp.eq.s32.totalorder %s17, 0
    %p125 = por %p123, %p124
    %p126 = scmp.ne.s32.totalorder %s112, %s113
    %p127 = scmp.eq.s32.totalorder %s18, 3
    %p128 = por %p126, %p127
    %p130 = scmp.ne.s32.totalorder %s113, %s129
    %p131 = scmp.eq.s32.totalorder %s18, 0
    %p132 = por %p130, %p131
    %s134 = sadd.s32 %s133, 1
    %p137 = scmp.eq.s32.totalorder %s12, 3
    %p138 = scmp.ne.s32.totalorder %s133, %s135
    %p139 = scmp.eq.s32.totalorder %s12, 0
    %p140 = por %p138, %p139
    %p141 = scmp.ne.s32.totalorder %s133, %s135
    %p142 = scmp.eq.s32.totalorder %s17, 3
    %p143 = por %p141, %p142
    %p144 = scmp.ne.s32.totalorder %s135, %s136
    %p145 = scmp.eq.s32.totalorder %s17, 0
    %p146 = por %p144, %p145
    %p147 = scmp.ne.s32.totalorder %s135, %s136
    %p148 = scmp.eq.s32.totalorder %s18, 3
    %p149 = por %p147, %p148
    %p151 = scmp.ne.s32.totalorder %s136, %s150
    %p152 = scmp.eq.s32.totalorder %s18, 0
    %p153 = por %p151, %p152
    %s154 = ssub.s32 %s20, %s27
    %p155 = scmp.eq.s32.totalorder %s154, 0
    %s157 = sadd.s32 %s156, 1
    %s158 = scalar_select %p155, %s156, %s157
    %p161 = pneg %p155
    %p162 = scmp.eq.s32.totalorder %s12, 3
    %p163 = por %p161, %p162
    %p164 = scmp.ne.s32.totalorder %s156, %s159
    %p165 = scmp.eq.s32.totalorder %s12, 0
    %p166 = por %p164, %p165
    %p167 = scmp.ne.s32.totalorder %s156, %s159
    %p168 = scmp.eq.s32.totalorder %s17, 3
    %p169 = por %p167, %p168
    %p170 = scmp.ne.s32.totalorder %s159, %s160
    %p171 = scmp.eq.s32.totalorder %s17, 0
    %p172 = por %p170, %p171
    %p173 = scmp.ne.s32.totalorder %s159, %s160
    %p174 = scmp.eq.s32.totalorder %s18, 3
    %p175 = por %p173, %p174
    %p177 = scmp.ne.s32.totalorder %s160, %s176
    %p178 = scmp.eq.s32.totalorder %s18, 0
    %p179 = por %p177, %p178
    %s180 = ssub.s32 %s20, %s27
    %s181 = ssub.s32 %s19, %s31
    %s182 = sor.u32 %s180, %s181
    %p183 = scmp.eq.s32.totalorder %s182, 0
    %s185 = sadd.s32 %s184, 1
    %s186 = scalar_select %p183, %s184, %s185
    %p189 = pneg %p183
    %p190 = scmp.eq.s32.totalorder %s12, 3
    %p191 = por %p189, %p190
    %p192 = scmp.ne.s32.totalorder %s184, %s187
    %p193 = scmp.eq.s32.totalorder %s12, 0
    %p194 = por %p192, %p193
    %p195 = scmp.ne.s32.totalorder %s184, %s187
    %p196 = scmp.eq.s32.totalorder %s17, 3
    %p197 = por %p195, %p196
    %p198 = scmp.ne.s32.totalorder %s187, %s188
    %p199 = scmp.eq.s32.totalorder %s17, 0
    %p200 = por %p198, %p199
    %p201 = scmp.ne.s32.totalorder %s187, %s188
    %p202 = scmp.eq.s32.totalorder %s18, 3
    %p203 = por %p201, %p202
    %p205 = scmp.ne.s32.totalorder %s188, %s204
    %p206 = scmp.eq.s32.totalorder %s18, 0
    %p207 = por %p205, %p206
    %p208 = scmp.le.s32.totalorder 1, %s12
    %p209 = scmp.lt.s32.totalorder %s12, 5
    %p210 = pnand %p208, %p209
    %p211 = pneg %p210
    // Predicated region
    $region9: #{tf_decoder_forward.3} parent=5 // pred_check
      _
    $region10: #{tf_decoder_forward.3} parent=5 // pred_check_branch
      %213 = sbr.rel (%p210) target = $region12
    $region11: #{tf_decoder_forward.3} parent=5 // pred_region
      %s214 = ssub.s32 %s12, 1
      // Predicated region
      $region13: #{tf_decoder_forward.3} parent=11 // pred_check
        %p215 = pneg %p78
      $region14: #{tf_decoder_forward.3} parent=11 // pred_check_branch
        %217 = sbr.rel (%p215) target = $region16
      $region15: #{tf_decoder_forward.3} parent=11 // pred_region
        %s218 = smul.u32 2, %s21
        %p219 = scmp.lt.s32.totalorder %s218, 1
        %s220 = scalar_select %p219, %s218, 1
        %s221 = smul.addr %s220, 4
        %s222 = scalar_lea.vmem %s1, %s221
        %s223 = smul.u32 2, %s21
      $region16: #{tf_decoder_forward.3} parent=11 // pred_fallthru
        _
      // Predicated region
      $region17: #{tf_decoder_forward.3} parent=11 // pred_check
        %p224 = pneg %p99
      $region18: #{tf_decoder_forward.3} parent=11 // pred_check_branch
        %226 = sbr.rel (%p224) target = $region20
      $region19: #{tf_decoder_forward.3} parent=11 // pred_region
        _
      $region20: #{tf_decoder_forward.3} parent=11 // pred_fallthru
        _
      // Predicated region
      $region21: #{tf_decoder_forward.3} parent=11 // pred_check
        %p227 = pneg %p146
      $region22: #{tf_decoder_forward.3} parent=11 // pred_check_branch
        %229 = sbr.rel (%p227) target = $region24
      $region23: #{tf_decoder_forward.3} parent=11 // pred_region
        _
      $region24: #{tf_decoder_forward.3} parent=11 // pred_fallthru
        _
    $region12: #{tf_decoder_forward.3} parent=5 // pred_fallthru
      _
    %p230 = scmp.lt.s32.totalorder %s12, 4
    // Predicated region
    $region25: #{tf_decoder_forward.3} parent=5 // pred_check
      %p231 = pneg %p230
    $region26: #{tf_decoder_forward.3} parent=5 // pred_check_branch
      %233 = sbr.rel (%p231) target = $region28
    $region27: #{tf_decoder_forward.3} parent=5 // pred_region
      // Predicated region
      $region29: #{tf_decoder_forward.3} parent=27 // pred_check
        %p234 = pneg %p46
      $region30: #{tf_decoder_forward.3} parent=27 // pred_check_branch
        %236 = sbr.rel (%p234) target = $region32
      $region31: #{tf_decoder_forward.3} parent=27 // pred_region
        %s237 = smul.u32 2, %s19
        %p238 = scmp.lt.s32.totalorder %s20, 3
        %s239 = scalar_select %p238, %s20, 3
        %p240 = scmp.lt.s32.totalorder %s237, 1
        %s241 = scalar_select %p240, %s237, 1
        %s242 = smul.addr %s239, 2
        %s243 = sadd.s32 %s241, %s242
        %s244 = smul.addr %s243, 4
        %s245 = scalar_lea.vmem %s0, %s244
        %s246 = smul.u32 2, %s19
      $region32: #{tf_decoder_forward.3} parent=27 // pred_fallthru
        _
      // Predicated region
      $region33: #{tf_decoder_forward.3} parent=27 // pred_check
        %p247 = pneg %p119
      $region34: #{tf_decoder_forward.3} parent=27 // pred_check_branch
        %249 = sbr.rel (%p247) target = $region36
      $region35: #{tf_decoder_forward.3} parent=27 // pred_region
        %p250 = scmp.lt.s32.totalorder %s20, 3
        %s251 = scalar_select %p250, %s20, 3
        %s252 = smul.addr %s251, 4
        %s253 = scalar_lea.vmem %s3, %s252
      $region36: #{tf_decoder_forward.3} parent=27 // pred_fallthru
        _
      // Predicated region
      $region37: #{tf_decoder_forward.3} parent=27 // pred_check
        %p254 = pneg %p166
      $region38: #{tf_decoder_forward.3} parent=27 // pred_check_branch
        %256 = sbr.rel (%p254) target = $region40
      $region39: #{tf_decoder_forward.3} parent=27 // pred_region
        %p257 = scmp.lt.s32.totalorder %s20, 3
        %s258 = scalar_select %p257, %s20, 3
        %s259 = scalar_lea.vmem %s5, %s258
      $region40: #{tf_decoder_forward.3} parent=27 // pred_fallthru
        _
    $region28: #{tf_decoder_forward.3} parent=5 // pred_fallthru
      _
    %p260 = scmp.le.s32.totalorder 1, %s12
    %p261 = scmp.lt.s32.totalorder %s12, 5
    %p262 = pnand %p260, %p261
    %p263 = pneg %p262
    // Predicated region
    $region41: #{tf_decoder_forward.3} parent=5 // pred_check
      _
    $region42: #{tf_decoder_forward.3} parent=5 // pred_check_branch
      %265 = sbr.rel (%p262) target = $region44
    $region43: #{tf_decoder_forward.3} parent=5 // pred_region
      %s266 = ssub.s32 %s12, 1
      %s267 = smul.u32 2, %s21
      %p268 = scmp.lt.s32.totalorder %s22, 3
      %s269 = scalar_select %p268, %s22, 3
      %p270 = scmp.lt.s32.totalorder %s267, 1
      %s271 = scalar_select %p270, %s267, 1
      %s272 = smul.addr %s269, 2
      %s273 = sadd.s32 %s271, %s272
      %s274 = smul.addr %s273, 4
      %s275 = scalar_lea.vmem %s0, %s274
      %p276 = pneg %p52
      %p277 = pneg %p49
      %s278 = smul.u32 2, %s21
      %p279 = scmp.lt.s32.totalorder %s278, 1
      %s280 = scalar_select %p279, %s278, 1
      %s281 = smul.addr %s280, 4
      %s282 = scalar_lea.vmem %s1, %s281
      %p283 = pneg %p78
      %p284 = pneg %p75
      %p285 = pneg %p99
      %p286 = pneg %p96
      %p287 = scmp.lt.s32.totalorder %s22, 3
      %s288 = scalar_select %p287, %s22, 3
      %s289 = smul.addr %s288, 4
      %s290 = scalar_lea.vmem %s3, %s289
      %p291 = pneg %p125
      %p292 = pneg %p122
      %p293 = pneg %p146
      %p294 = pneg %p143
      %p295 = scmp.lt.s32.totalorder %s22, 3
      %s296 = scalar_select %p295, %s22, 3
      %s297 = scalar_lea.vmem %s5, %s296
      %p298 = pneg %p172
      %p299 = pneg %p169
      %p300 = pneg %p200
      %p301 = pneg %p197
      %s302 = smul.u32 2, %s21
      %p303 = scmp.lt.s32.totalorder %s22, 3
      %s304 = scalar_select %p303, %s22, 3
      %p305 = scmp.lt.s32.totalorder %s302, 1
      %s306 = scalar_select %p305, %s302, 1
      %s307 = smul.addr %s304, 2
      %s308 = sadd.s32 %s306, %s307
      %s309 = smul.addr %s308, 8
      %s310 = scalar_lea.vmem %s6, %s309
      %s311 = smul.u32 2, %s21
      %p312 = scmp.lt.s32.totalorder %s22, 3
      %s313 = scalar_select %p312, %s22, 3
      %p314 = scmp.lt.s32.totalorder %s311, 1
      %s315 = scalar_select %p314, %s311, 1
      %s316 = smul.addr %s313, 2
      %s317 = sadd.s32 %s315, %s316
      %s318 = smul.addr %s317, 4
      %s319 = scalar_lea.vmem %s0, %s318
      %s320 = smul.u32 2, %s21
      %s321 = smul.u32 2, %s21
      %p322 = scmp.lt.s32.totalorder %s321, 1
      %s323 = scalar_select %p322, %s321, 1
      %s324 = smul.addr %s323, 4
      %s325 = scalar_lea.vmem %s1, %s324
      %s326 = smul.u32 2, %s21
      %p327 = scmp.lt.s32.totalorder %s22, 3
      %s328 = scalar_select %p327, %s22, 3
      %s329 = smul.addr %s328, 4
      %s330 = scalar_lea.vmem %s3, %s329
      %p331 = scmp.lt.s32.totalorder %s22, 3
      %s332 = scalar_select %p331, %s22, 3
      %s333 = scalar_lea.vmem %s5, %s332
      %s334 = smul.u32 2, %s21
      %p335 = scmp.lt.s32.totalorder %s22, 3
      %s336 = scalar_select %p335, %s22, 3
      %p337 = scmp.lt.s32.totalorder %s334, 1
      %s338 = scalar_select %p337, %s334, 1
      %s339 = smul.addr %s336, 2
      %s340 = sadd.s32 %s338, %s339
      %s341 = smul.addr %s340, 8
      %s342 = scalar_lea.vmem %s6, %s341
      %s343 = smul.u32 2, %s21
      %v345 = vld [vmem:[%s319] sm:$0xf]
      %v346 = vld [vmem:[%s319 + $0x4] sm:$0xf]
      %v347 = vld [vmem:[%s2] sm:$0xf]
      %v348 = vld [vmem:[%s2 + $0x4] sm:$0xf]
      %v349 = vld [vmem:[%s2 + $0x8] sm:$0xf]
      %v350 = vld [vmem:[%s2 + $0xc] sm:$0xf]
      %v351 = vld [vmem:[%s2 + $0x10] sm:$0xf]
      %v352 = vld [vmem:[%s2 + $0x14] sm:$0xf]
      %v353 = vld [vmem:[%s2 + $0x18] sm:$0xf]
      %v354 = vld [vmem:[%s2 + $0x1c] sm:$0xf]
      %v355 = vld [vmem:[%s2 + $0x20] sm:$0xf]
      %v356 = vld [vmem:[%s2 + $0x24] sm:$0xf]
      %v357 = vld [vmem:[%s2 + $0x28] sm:$0xf]
      %v358 = vld [vmem:[%s2 + $0x2c] sm:$0xf]
      %v359 = vld [vmem:[%s2 + $0x30] sm:$0xf]
      %v360 = vld [vmem:[%s2 + $0x34] sm:$0xf]
      %v361 = vld [vmem:[%s2 + $0x38] sm:$0xf]
      %v362 = vld [vmem:[%s2 + $0x3c] sm:$0xf]
      %v365 = vunpack.c.l.b16 %v345
      %v366 = vunpack.c.l.b16 %v346
      %v367 = vpack.c.b16 %v366, %v365
      %v385 = vunpack.c.l.b16 %v347
      %v386 = vunpack.c.l.b16 %v348
      %v387 = vunpack.c.l.b16 %v349
      %v388 = vunpack.c.l.b16 %v350
      %v389 = vunpack.c.l.b16 %v351
      %v390 = vunpack.c.l.b16 %v352
      %v391 = vunpack.c.l.b16 %v353
      %v392 = vunpack.c.l.b16 %v354
      %v393 = vunpack.c.l.b16 %v355
      %v394 = vunpack.c.l.b16 %v356
      %v395 = vunpack.c.l.b16 %v357
      %v396 = vunpack.c.l.b16 %v358
      %v397 = vunpack.c.l.b16 %v359
      %v398 = vunpack.c.l.b16 %v360
      %v399 = vunpack.c.l.b16 %v361
      %v400 = vunpack.c.l.b16 %v362
      %v401 = vpack.c.b16 %v386, %v385
      %v402 = vpack.c.b16 %v388, %v387
      %v403 = vpack.c.b16 %v390, %v389
      %v404 = vpack.c.b16 %v392, %v391
      %v405 = vpack.c.b16 %v394, %v393
      %v406 = vpack.c.b16 %v396, %v395
      %v407 = vpack.c.b16 %v398, %v397
      %v408 = vpack.c.b16 %v400, %v399
      %417 = vmatprep.subr.bf16.mxu0 0
      %418 = vmatpush1.bf16.msra.mxu0 %v408
      %419 = vmatprep.subr.bf16.mxu0 0
      %420 = vmatpush1.bf16.msra.mxu0 %v407
      %421 = vmatprep.subr.bf16.mxu0 0
      %422 = vmatpush1.bf16.msra.mxu0 %v406
      %423 = vmatprep.subr.bf16.mxu0 0
      %424 = vmatpush1.bf16.msra.mxu0 %v405
      %425 = vmatprep.subr.bf16.mxu0 0
      %426 = vmatpush1.bf16.msra.mxu0 %v404
      %427 = vmatprep.subr.bf16.mxu0 0
      %428 = vmatpush1.bf16.msra.mxu0 %v403
      %429 = vmatprep.subr.bf16.mxu0 0
      %430 = vmatpush1.bf16.msra.mxu0 %v402
      %431 = vmatprep.subr.bf16.mxu0 0
      %432 = vmatpush1.bf16.msra.mxu0 %v401
      %433 = vmatprep.subr.bf16.mxu0 0
      %434 = vmatpush2.bf16.msra.mxu0 0
      %435 = vmatprep.subr.bf16.mxu0 0
      %436 = vmatpush2.bf16.msra.mxu0 0
      %437 = vmatprep.subr.bf16.mxu0 0
      %438 = vmatpush2.bf16.msra.mxu0 0
      %439 = vmatprep.subr.bf16.mxu0 0
      %440 = vmatpush2.bf16.msra.mxu0 0
      %441 = vmatprep.subr.bf16.mxu0 0
      %442 = vmatpush2.bf16.msra.mxu0 0
      %443 = vmatprep.subr.bf16.mxu0 0
      %444 = vmatpush2.bf16.msra.mxu0 0
      %445 = vmatprep.subr.bf16.mxu0 0
      %446 = vmatpush2.bf16.msra.mxu0 0
      %447 = vmatprep.subr.bf16.mxu0 0
      %448 = vmatpush2.bf16.msra.mxu0 0
      %449 = vmatprep.mubr.bf16.mxu0 0
      %450 = vmatmul.mubr.bf16.gmra.mxu0 %v367
      %v451 = vpop.f32.mrf.mxu0
      %v452 = vadd.f32 0.0, %v451
      %v453 = vpop.f32.mrf.mxu0
      %v454 = vpop.f32.mrf.mxu0
      %v455 = vadd.f32 0.0, %v454
      %v456 = vpop.f32.mrf.mxu0
      %457 = vdwg.mxu0
      %v458 = vld [vmem:[%s325] sm:$0xf]
      %v459 = vld [vmem:[%s325 + $0x4] sm:$0xf]
      %v460 = vld [vmem:[%s330] sm:$0xf]
      %v461 = vld [vmem:[%s4] sm:$0x1]
      %v463 = vlaneseq
      %v464 = vshrl.u32 %v463, 7
      %v465 = vsub.s32 0, %v464
      %v466 = vrot.slane %v461, %v465
      %v470 = vunpack.c.l.b16 %v458
      %v471 = vunpack.c.l.b16 %v459
      %v472 = vpack.c.b16 %v471, %v470
      %vm473 = vcmask 64512
      %v475 = vsel %vm473, %v472, 0
      %vm477 = vcmask 1043456
      %v479 = vsel %vm477, %v460, 0
      %481 = vmatprep.subr.bf16.mxu0 0
      %482 = vmatpush1.bf16.msra.mxu0 0
      %483 = vmatprep.subr.bf16.mxu0 0
      %484 = vmatpush1.bf16.msra.mxu0 0
      %485 = vmatprep.subr.bf16.mxu0 0
      %486 = vmatpush1.bf16.msra.mxu0 0
      %487 = vmatprep.subr.bf16.mxu0 0
      %488 = vmatpush1.bf16.msra.mxu0 0
      %489 = vmatprep.subr.bf16.mxu0 0
      %490 = vmatpush1.bf16.msra.mxu0 0
      %491 = vmatprep.subr.bf16.mxu0 0
      %492 = vmatpush1.bf16.msra.mxu0 0
      %493 = vmatprep.subr.bf16.mxu0 0
      %494 = vmatpush1.bf16.msra.mxu0 0
      %495 = vmatprep.subr.bf16.mxu0 0
      %496 = vmatpush1.bf16.msra.mxu0 %v479
      %497 = vmatprep.subr.bf16.mxu0 0
      %498 = vmatpush2.bf16.msra.mxu0 0
      %499 = vmatprep.subr.bf16.mxu0 0
      %500 = vmatpush2.bf16.msra.mxu0 0
      %501 = vmatprep.subr.bf16.mxu0 0
      %502 = vmatpush2.bf16.msra.mxu0 0
      %503 = vmatprep.subr.bf16.mxu0 0
      %504 = vmatpush2.bf16.msra.mxu0 0
      %505 = vmatprep.subr.bf16.mxu0 0
      %506 = vmatpush2.bf16.msra.mxu0 0
      %507 = vmatprep.subr.bf16.mxu0 0
      %508 = vmatpush2.bf16.msra.mxu0 0
      %509 = vmatprep.subr.bf16.mxu0 0
      %510 = vmatpush2.bf16.msra.mxu0 0
      %511 = vmatprep.subr.bf16.mxu0 0
      %512 = vmatpush2.bf16.msra.mxu0 0
      %513 = vmatprep.mubr.bf16.mxu0 0
      %514 = vmatmul.mubr.bf16.gmra.mxu0 %v475
      %v515 = vpop.f32.mrf.mxu0
      %v516 = vadd.f32 %v466, %v515
      %v517 = vpop.f32.mrf.mxu0
      %v518 = vpop.f32.mrf.mxu0
      %v519 = vadd.f32 %v466, %v518
      %v520 = vpop.f32.mrf.mxu0
      %521 = vdwg.mxu0
      %v522 = vld [vmem:[%s333] sm:$0x1]
      %v524 = vlaneseq
      %v525 = vshrl.u32 %v524, 7
      %v526 = vsub.s32 0, %v525
      %v527 = vrot.slane %v522, %v526
      %528 = vset.pattern.permute.xlu0 0
      %529 = vperm.xlu0 %528, %v527
      %v530 = vpop.permute.xlu0 %529
      %v532 = vmul.f32 %v452, %v530
      %v533 = vmul.f32 %v455, %v530
      %534 = vset.pattern.permute.xlu0 1
      %535 = vperm.xlu0 %534, %v527
      %v536 = vpop.permute.xlu0 %535
      %v538 = vadd.f32 %v532, %v536
      %v539 = vadd.f32 %v533, %v536
      %540 = vset.pattern.permute.xlu0 2
      %541 = vperm.xlu0 %540, %v527
      %v542 = vpop.permute.xlu0 %541
      %v544 = vmul.f32 %v516, %v542
      %v545 = vmul.f32 %v519, %v542
      %546 = vset.pattern.permute.xlu0 3
      %547 = vperm.xlu0 %546, %v527
      %v548 = vpop.permute.xlu0 %547
      %v550 = vadd.f32 %v544, %v548
      %v551 = vadd.f32 %v545, %v548
      %v552 = vmax.f32 %v550, 0.0
      %v553 = vmax.f32 %v551, 0.0
      %v554 = vadd.f32 %v538, %v552
      %v555 = vadd.f32 %v539, %v553
      %556 = vst [vmem:[%s342] sm:$0xff] %v554
      %557 = vst [vmem:[%s342 + $0x8] sm:$0xff] %v555
      %s558 = smul.u32 2, %s21
      %p559 = scmp.lt.s32.totalorder %s22, 3
      %s560 = scalar_select %p559, %s22, 3
      %p561 = scmp.lt.s32.totalorder %s558, 1
      %s562 = scalar_select %p561, %s558, 1
      %s563 = smul.addr %s560, 2
      %s564 = sadd.s32 %s562, %s563
      %s565 = smul.addr %s564, 8
      %s566 = scalar_lea.vmem %s6, %s565
      // Predicated region
      $region45: #{tf_decoder_forward.3} parent=43 // pred_check
        %p567 = pneg %p197
      $region46: #{tf_decoder_forward.3} parent=43 // pred_check_branch
        %569 = sbr.rel (%p567) target = $region48
      $region47: #{tf_decoder_forward.3} parent=43 // pred_region
        %s570 = smul.u32 2, %s21
      $region48: #{tf_decoder_forward.3} parent=43 // pred_fallthru
        _
    $region44: #{tf_decoder_forward.3} parent=5 // pred_fallthru
      _
    %p571 = scmp.le.s32.totalorder 2, %s12
    // Predicated region
    $region49: #{tf_decoder_forward.3} parent=5 // pred_check
      %p572 = pneg %p571
    $region50: #{tf_decoder_forward.3} parent=5 // pred_check_branch
      %574 = sbr.rel (%p572) target = $region52
    $region51: #{tf_decoder_forward.3} parent=5 // pred_region
      %s575 = ssub.s32 %s12, 2
      // Predicated region
      $region53: #{tf_decoder_forward.3} parent=51 // pred_check
        %p576 = pneg %p203
      $region54: #{tf_decoder_forward.3} parent=51 // pred_check_branch
        %578 = sbr.rel (%p576) target = $region56
      $region55: #{tf_decoder_forward.3} parent=51 // pred_region
        %s579 = smul.u32 2, %s23
        %p580 = scmp.lt.s32.totalorder %s24, 3
        %s581 = scalar_select %p580, %s24, 3
        %p582 = scmp.lt.s32.totalorder %s579, 1
        %s583 = scalar_select %p582, %s579, 1
        %s584 = smul.addr %s581, 2
        %s585 = sadd.s32 %s583, %s584
        %s586 = smul.addr %s585, 8
        %s587 = scalar_lea.vmem %s6, %s586
      $region56: #{tf_decoder_forward.3} parent=51 // pred_fallthru
        _
    $region52: #{tf_decoder_forward.3} parent=5 // pred_fallthru
      _
  $region6: #{tf_decoder_forward.3} parent=0 // loop_footer
    %s16 = sadd.s32 1, %s12
  $region7: #{tf_decoder_forward.3} parent=0 // loop_footer_branch
    %11 = sbr.rel target = $region3
  $region8: #{tf_decoder_forward.3} parent=0 // loop_exit
    _

// kernel: tf_decoder_forward.2
$region0: #{tf_decoder_forward.2}
  #allocation0 [shape = 'u32[]', space=smem, size = 0x4, offset = 0x4, fixed_abs, tag = 'smem constant byte address 0x4 - core index']
  #allocation1 [shape = 'u32[144,128]{1,0:T(1,128)}', space=vmem, size = 0x12000, scoped, tag = 'internal scratch']
  %s0 = inlined_call_operand.vmem [shape: bf16[4,16,128], index: 0, kind: input, shape index: {}]
  %s1 = inlined_call_operand.vmem [shape: bf16[16,8], index: 1, kind: input, shape index: {}]
  %s2 = inlined_call_operand.vmem [shape: bf16[128,128], index: 2, kind: input, shape index: {}]
  %s3 = inlined_call_operand.vmem [shape: bf16[4,8,128], index: 3, kind: input, shape index: {}]
  %s4 = inlined_call_operand.vmem [shape: f32[1,128], index: 4, kind: input, shape index: {}]
  %s5 = inlined_call_operand.vmem [shape: f32[4,16,4], index: 5, kind: output, shape index: {}]
  %s6 = sld [smem:[#allocation0]]
  $region53: #{tf_decoder_forward.2} parent=0
    _
  %s8 = ssub.s32 1, %s6
  %s9 = scalar_select 0, %s8, %s6
  loop: start=0, step=1, limit=6
  $region2: #{tf_decoder_forward.2} parent=0 // loop_pre_header
    _
  $region3: #{tf_decoder_forward.2} parent=0 // loop_header
    %s11 = sphi 0, %s15
    %p12 = scmp.ge.s32.totalorder %s11, 6
    %s18 = sphi 0, %s30
    %s19 = sphi 0, %s26
    %s20 = sphi 0, %s18
    %s21 = sphi 0, %s19
    %s22 = sphi 0, %s20
    %s23 = sphi 0, %s21
    %s35 = sphi 0, %s37
    %s38 = sphi 0, %s35
    %s39 = sphi 0, %s38
    %s55 = sphi 0, %s39
    %s61 = sphi 0, %s63
    %s64 = sphi 0, %s61
    %s65 = sphi 0, %s64
    %s81 = sphi 0, %s65
    %s85 = sphi 0, %s85
    %s87 = sphi 0, %s85
    %s88 = sphi 0, %s87
    %s102 = sphi 0, %s88
    %s108 = sphi 0, %s110
    %s111 = sphi 0, %s108
    %s112 = sphi 0, %s111
    %s128 = sphi 0, %s112
    %s132 = sphi 0, %s132
    %s134 = sphi 0, %s132
    %s135 = sphi 0, %s134
    %s149 = sphi 0, %s135
    %s157 = sphi 0, %s159
    %s160 = sphi 0, %s157
    %s161 = sphi 0, %s160
    %s177 = sphi 0, %s161
  $region4: #{tf_decoder_forward.2} parent=0 // loop_header_branch
    %14 = sbr.rel (%p12) target = $region8
  $region5: #{tf_decoder_forward.2} parent=0 // loop_body
    %s16 = ssub.s32 %s11, 1
    %s17 = ssub.s32 %s11, 2
    %s24 = sadd.s32 1, %s19
    %p25 = scmp.ge.s32.totalorder %s24, 4
    %s26 = scalar_select %p25, 0, %s24
    %s27 = sadd.s32 1, %s18
    %s28 = scalar_select %p25, %s27, %s18
    %p29 = scmp.ge.s32.totalorder %s28, 1
    %s30 = scalar_select %p29, 0, %s28
    %s31 = ssub.s32 %s19, %s26
    %s32 = ssub.s32 %s18, %s30
    %s33 = sor.u32 %s31, %s32
    %p34 = scmp.eq.s32.totalorder %s33, 0
    %s36 = sadd.s32 %s35, 1
    %s37 = scalar_select %p34, %s35, %s36
    %p40 = pneg %p34
    %p41 = scmp.eq.s32.totalorder %s11, 3
    %p42 = por %p40, %p41
    %p43 = scmp.ne.s32.totalorder %s35, %s38
    %p44 = scmp.eq.s32.totalorder %s11, 0
    %p45 = por %p43, %p44
    %p46 = scmp.ne.s32.totalorder %s35, %s38
    %p47 = scmp.eq.s32.totalorder %s16, 3
    %p48 = por %p46, %p47
    %p49 = scmp.ne.s32.totalorder %s38, %s39
    %p50 = scmp.eq.s32.totalorder %s16, 0
    %p51 = por %p49, %p50
    %p52 = scmp.ne.s32.totalorder %s38, %s39
    %p53 = scmp.eq.s32.totalorder %s17, 3
    %p54 = por %p52, %p53
    %p56 = scmp.ne.s32.totalorder %s39, %s55
    %p57 = scmp.eq.s32.totalorder %s17, 0
    %p58 = por %p56, %p57
    %s59 = ssub.s32 %s18, %s30
    %p60 = scmp.eq.s32.totalorder %s59, 0
    %s62 = sadd.s32 %s61, 1
    %s63 = scalar_select %p60, %s61, %s62
    %p66 = pneg %p60
    %p67 = scmp.eq.s32.totalorder %s11, 3
    %p68 = por %p66, %p67
    %p69 = scmp.ne.s32.totalorder %s61, %s64
    %p70 = scmp.eq.s32.totalorder %s11, 0
    %p71 = por %p69, %p70
    %p72 = scmp.ne.s32.totalorder %s61, %s64
    %p73 = scmp.eq.s32.totalorder %s16, 3
    %p74 = por %p72, %p73
    %p75 = scmp.ne.s32.totalorder %s64, %s65
    %p76 = scmp.eq.s32.totalorder %s16, 0
    %p77 = por %p75, %p76
    %p78 = scmp.ne.s32.totalorder %s64, %s65
    %p79 = scmp.eq.s32.totalorder %s17, 3
    %p80 = por %p78, %p79
    %p82 = scmp.ne.s32.totalorder %s65, %s81
    %p83 = scmp.eq.s32.totalorder %s17, 0
    %p84 = por %p82, %p83
    %s86 = sadd.s32 %s85, 1
    %p89 = scmp.eq.s32.totalorder %s11, 3
    %p90 = scmp.ne.s32.totalorder %s85, %s87
    %p91 = scmp.eq.s32.totalorder %s11, 0
    %p92 = por %p90, %p91
    %p93 = scmp.ne.s32.totalorder %s85, %s87
    %p94 = scmp.eq.s32.totalorder %s16, 3
    %p95 = por %p93, %p94
    %p96 = scmp.ne.s32.totalorder %s87, %s88
    %p97 = scmp.eq.s32.totalorder %s16, 0
    %p98 = por %p96, %p97
    %p99 = scmp.ne.s32.totalorder %s87, %s88
    %p100 = scmp.eq.s32.totalorder %s17, 3
    %p101 = por %p99, %p100
    %p103 = scmp.ne.s32.totalorder %s88, %s102
    %p104 = scmp.eq.s32.totalorder %s17, 0
    %p105 = por %p103, %p104
    %s106 = ssub.s32 %s19, %s26
    %p107 = scmp.eq.s32.totalorder %s106, 0
    %s109 = sadd.s32 %s108, 1
    %s110 = scalar_select %p107, %s108, %s109
    %p113 = pneg %p107
    %p114 = scmp.eq.s32.totalorder %s11, 3
    %p115 = por %p113, %p114
    %p116 = scmp.ne.s32.totalorder %s108, %s111
    %p117 = scmp.eq.s32.totalorder %s11, 0
    %p118 = por %p116, %p117
    %p119 = scmp.ne.s32.totalorder %s108, %s111
    %p120 = scmp.eq.s32.totalorder %s16, 3
    %p121 = por %p119, %p120
    %p122 = scmp.ne.s32.totalorder %s111, %s112
    %p123 = scmp.eq.s32.totalorder %s16, 0
    %p124 = por %p122, %p123
    %p125 = scmp.ne.s32.totalorder %s111, %s112
    %p126 = scmp.eq.s32.totalorder %s17, 3
    %p127 = por %p125, %p126
    %p129 = scmp.ne.s32.totalorder %s112, %s128
    %p130 = scmp.eq.s32.totalorder %s17, 0
    %p131 = por %p129, %p130
    %s133 = sadd.s32 %s132, 1
    %p136 = scmp.eq.s32.totalorder %s11, 3
    %p137 = scmp.ne.s32.totalorder %s132, %s134
    %p138 = scmp.eq.s32.totalorder %s11, 0
    %p139 = por %p137, %p138
    %p140 = scmp.ne.s32.totalorder %s132, %s134
    %p141 = scmp.eq.s32.totalorder %s16, 3
    %p142 = por %p140, %p141
    %p143 = scmp.ne.s32.totalorder %s134, %s135
    %p144 = scmp.eq.s32.totalorder %s16, 0
    %p145 = por %p143, %p144
    %p146 = scmp.ne.s32.totalorder %s134, %s135
    %p147 = scmp.eq.s32.totalorder %s17, 3
    %p148 = por %p146, %p147
    %p150 = scmp.ne.s32.totalorder %s135, %s149
    %p151 = scmp.eq.s32.totalorder %s17, 0
    %p152 = por %p150, %p151
    %s153 = ssub.s32 %s19, %s26
    %s154 = ssub.s32 %s18, %s30
    %s155 = sor.u32 %s153, %s154
    %p156 = scmp.eq.s32.totalorder %s155, 0
    %s158 = sadd.s32 %s157, 1
    %s159 = scalar_select %p156, %s157, %s158
    %p162 = pneg %p156
    %p163 = scmp.eq.s32.totalorder %s11, 3
    %p164 = por %p162, %p163
    %p165 = scmp.ne.s32.totalorder %s157, %s160
    %p166 = scmp.eq.s32.totalorder %s11, 0
    %p167 = por %p165, %p166
    %p168 = scmp.ne.s32.totalorder %s157, %s160
    %p169 = scmp.eq.s32.totalorder %s16, 3
    %p170 = por %p168, %p169
    %p171 = scmp.ne.s32.totalorder %s160, %s161
    %p172 = scmp.eq.s32.totalorder %s16, 0
    %p173 = por %p171, %p172
    %p174 = scmp.ne.s32.totalorder %s160, %s161
    %p175 = scmp.eq.s32.totalorder %s17, 3
    %p176 = por %p174, %p175
    %p178 = scmp.ne.s32.totalorder %s161, %s177
    %p179 = scmp.eq.s32.totalorder %s17, 0
    %p180 = por %p178, %p179
    %p181 = scmp.le.s32.totalorder 1, %s11
    %p182 = scmp.lt.s32.totalorder %s11, 5
    %p183 = pnand %p181, %p182
    %p184 = pneg %p183
    // Predicated region
    $region9: #{tf_decoder_forward.2} parent=5 // pred_check
      _
    $region10: #{tf_decoder_forward.2} parent=5 // pred_check_branch
      %186 = sbr.rel (%p183) target = $region12
    $region11: #{tf_decoder_forward.2} parent=5 // pred_region
      %s187 = ssub.s32 %s11, 1
      // Predicated region
      $region13: #{tf_decoder_forward.2} parent=11 // pred_check
        %p188 = pneg %p77
      $region14: #{tf_decoder_forward.2} parent=11 // pred_check_branch
        %190 = sbr.rel (%p188) target = $region16
      $region15: #{tf_decoder_forward.2} parent=11 // pred_region
        %s191 = smul.u32 2, %s20
        %p192 = scmp.lt.s32.totalorder %s191, 1
        %s193 = scalar_select %p192, %s191, 1
        %s194 = smul.addr %s193, 4
        %s195 = scalar_lea.vmem %s1, %s194
        %s196 = smul.u32 2, %s20
      $region16: #{tf_decoder_forward.2} parent=11 // pred_fallthru
        _
      // Predicated region
      $region17: #{tf_decoder_forward.2} parent=11 // pred_check
        %p197 = pneg %p98
      $region18: #{tf_decoder_forward.2} parent=11 // pred_check_branch
        %199 = sbr.rel (%p197) target = $region20
      $region19: #{tf_decoder_forward.2} parent=11 // pred_region
        _
      $region20: #{tf_decoder_forward.2} parent=11 // pred_fallthru
        _
      // Predicated region
      $region21: #{tf_decoder_forward.2} parent=11 // pred_check
        %p200 = pneg %p145
      $region22: #{tf_decoder_forward.2} parent=11 // pred_check_branch
        %202 = sbr.rel (%p200) target = $region24
      $region23: #{tf_decoder_forward.2} parent=11 // pred_region
        _
      $region24: #{tf_decoder_forward.2} parent=11 // pred_fallthru
        _
    $region12: #{tf_decoder_forward.2} parent=5 // pred_fallthru
      _
    %p203 = scmp.lt.s32.totalorder %s11, 4
    // Predicated region
    $region25: #{tf_decoder_forward.2} parent=5 // pred_check
      %p204 = pneg %p203
    $region26: #{tf_decoder_forward.2} parent=5 // pred_check_branch
      %206 = sbr.rel (%p204) target = $region28
    $region27: #{tf_decoder_forward.2} parent=5 // pred_region
      // Predicated region
      $region29: #{tf_decoder_forward.2} parent=27 // pred_check
        %p207 = pneg %p45
      $region30: #{tf_decoder_forward.2} parent=27 // pred_check_branch
        %209 = sbr.rel (%p207) target = $region32
      $region31: #{tf_decoder_forward.2} parent=27 // pred_region
        %s210 = smul.u32 2, %s18
        %p211 = scmp.lt.s32.totalorder %s19, 3
        %s212 = scalar_select %p211, %s19, 3
        %p213 = scmp.lt.s32.totalorder %s210, 1
        %s214 = scalar_select %p213, %s210, 1
        %s215 = smul.addr %s212, 2
        %s216 = sadd.s32 %s214, %s215
        %s217 = smul.addr %s216, 4
        %s218 = scalar_lea.vmem %s0, %s217
        %s219 = smul.u32 2, %s18
      $region32: #{tf_decoder_forward.2} parent=27 // pred_fallthru
        _
      // Predicated region
      $region33: #{tf_decoder_forward.2} parent=27 // pred_check
        %p220 = pneg %p118
      $region34: #{tf_decoder_forward.2} parent=27 // pred_check_branch
        %222 = sbr.rel (%p220) target = $region36
      $region35: #{tf_decoder_forward.2} parent=27 // pred_region
        %p223 = scmp.lt.s32.totalorder %s19, 3
        %s224 = scalar_select %p223, %s19, 3
        %s225 = smul.addr %s224, 4
        %s226 = scalar_lea.vmem %s3, %s225
      $region36: #{tf_decoder_forward.2} parent=27 // pred_fallthru
        _
    $region28: #{tf_decoder_forward.2} parent=5 // pred_fallthru
      _
    %p227 = scmp.le.s32.totalorder 1, %s11
    %p228 = scmp.lt.s32.totalorder %s11, 5
    %p229 = pnand %p227, %p228
    %p230 = pneg %p229
    // Predicated region
    $region37: #{tf_decoder_forward.2} parent=5 // pred_check
      _
    $region38: #{tf_decoder_forward.2} parent=5 // pred_check_branch
      %232 = sbr.rel (%p229) target = $region40
    $region39: #{tf_decoder_forward.2} parent=5 // pred_region
      %s233 = ssub.s32 %s11, 1
      %s234 = smul.u32 2, %s20
      %p235 = scmp.lt.s32.totalorder %s21, 3
      %s236 = scalar_select %p235, %s21, 3
      %p237 = scmp.lt.s32.totalorder %s234, 1
      %s238 = scalar_select %p237, %s234, 1
      %s239 = smul.addr %s236, 2
      %s240 = sadd.s32 %s238, %s239
      %s241 = smul.addr %s240, 4
      %s242 = scalar_lea.vmem %s0, %s241
      %p243 = pneg %p51
      %p244 = pneg %p48
      %s245 = smul.u32 2, %s20
      %p246 = scmp.lt.s32.totalorder %s245, 1
      %s247 = scalar_select %p246, %s245, 1
      %s248 = smul.addr %s247, 4
      %s249 = scalar_lea.vmem %s1, %s248
      %p250 = pneg %p77
      %p251 = pneg %p74
      %p252 = pneg %p98
      %p253 = pneg %p95
      %p254 = scmp.lt.s32.totalorder %s21, 3
      %s255 = scalar_select %p254, %s21, 3
      %s256 = smul.addr %s255, 4
      %s257 = scalar_lea.vmem %s3, %s256
      %p258 = pneg %p124
      %p259 = pneg %p121
      %p260 = pneg %p145
      %p261 = pneg %p142
      %p262 = pneg %p173
      %p263 = pneg %p170
      %s264 = smul.u32 2, %s20
      %p265 = scmp.lt.s32.totalorder %s21, 3
      %s266 = scalar_select %p265, %s21, 3
      %p267 = scmp.lt.s32.totalorder %s264, 1
      %s268 = scalar_select %p267, %s264, 1
      %s269 = smul.addr %s266, 2
      %s270 = sadd.s32 %s268, %s269
      %s271 = smul.addr %s270, 8
      %s272 = scalar_lea.vmem %s5, %s271
      %s273 = smul.u32 2, %s20
      %p274 = scmp.lt.s32.totalorder %s21, 3
      %s275 = scalar_select %p274, %s21, 3
      %p276 = scmp.lt.s32.totalorder %s273, 1
      %s277 = scalar_select %p276, %s273, 1
      %s278 = smul.addr %s275, 2
      %s279 = sadd.s32 %s277, %s278
      %s280 = smul.addr %s279, 4
      %s281 = scalar_lea.vmem %s0, %s280
      %s282 = smul.u32 2, %s20
      %s283 = smul.u32 2, %s20
      %p284 = scmp.lt.s32.totalorder %s283, 1
      %s285 = scalar_select %p284, %s283, 1
      %s286 = smul.addr %s285, 4
      %s287 = scalar_lea.vmem %s1, %s286
      %s288 = smul.u32 2, %s20
      %p289 = scmp.lt.s32.totalorder %s21, 3
      %s290 = scalar_select %p289, %s21, 3
      %s291 = smul.addr %s290, 4
      %s292 = scalar_lea.vmem %s3, %s291
      %s293 = smul.u32 2, %s20
      %p294 = scmp.lt.s32.totalorder %s21, 3
      %s295 = scalar_select %p294, %s21, 3
      %p296 = scmp.lt.s32.totalorder %s293, 1
      %s297 = scalar_select %p296, %s293, 1
      %s298 = smul.addr %s295, 2
      %s299 = sadd.s32 %s297, %s298
      %s300 = smul.addr %s299, 8
      %s301 = scalar_lea.vmem %s5, %s300
      %s302 = smul.u32 2, %s20
      %v304 = vld [vmem:[%s281] sm:$0xf]
      %v305 = vld [vmem:[%s281 + $0x4] sm:$0xf]
      %v306 = vld [vmem:[%s2] sm:$0xf]
      %v307 = vld [vmem:[%s2 + $0x4] sm:$0xf]
      %v308 = vld [vmem:[%s2 + $0x8] sm:$0xf]
      %v309 = vld [vmem:[%s2 + $0xc] sm:$0xf]
      %v310 = vld [vmem:[%s2 + $0x10] sm:$0xf]
      %v311 = vld [vmem:[%s2 + $0x14] sm:$0xf]
      %v312 = vld [vmem:[%s2 + $0x18] sm:$0xf]
      %v313 = vld [vmem:[%s2 + $0x1c] sm:$0xf]
      %v314 = vld [vmem:[%s2 + $0x20] sm:$0xf]
      %v315 = vld [vmem:[%s2 + $0x24] sm:$0xf]
      %v316 = vld [vmem:[%s2 + $0x28] sm:$0xf]
      %v317 = vld [vmem:[%s2 + $0x2c] sm:$0xf]
      %v318 = vld [vmem:[%s2 + $0x30] sm:$0xf]
      %v319 = vld [vmem:[%s2 + $0x34] sm:$0xf]
      %v320 = vld [vmem:[%s2 + $0x38] sm:$0xf]
      %v321 = vld [vmem:[%s2 + $0x3c] sm:$0xf]
      %v324 = vunpack.c.l.b16 %v304
      %v325 = vunpack.c.l.b16 %v305
      %v326 = vpack.c.b16 %v325, %v324
      %v344 = vunpack.c.l.b16 %v306
      %v345 = vunpack.c.l.b16 %v307
      %v346 = vunpack.c.l.b16 %v308
      %v347 = vunpack.c.l.b16 %v309
      %v348 = vunpack.c.l.b16 %v310
      %v349 = vunpack.c.l.b16 %v311
      %v350 = vunpack.c.l.b16 %v312
      %v351 = vunpack.c.l.b16 %v313
      %v352 = vunpack.c.l.b16 %v314
      %v353 = vunpack.c.l.b16 %v315
      %v354 = vunpack.c.l.b16 %v316
      %v355 = vunpack.c.l.b16 %v317
      %v356 = vunpack.c.l.b16 %v318
      %v357 = vunpack.c.l.b16 %v319
      %v358 = vunpack.c.l.b16 %v320
      %v359 = vunpack.c.l.b16 %v321
      %v360 = vpack.c.b16 %v345, %v344
      %v361 = vpack.c.b16 %v347, %v346
      %v362 = vpack.c.b16 %v349, %v348
      %v363 = vpack.c.b16 %v351, %v350
      %v364 = vpack.c.b16 %v353, %v352
      %v365 = vpack.c.b16 %v355, %v354
      %v366 = vpack.c.b16 %v357, %v356
      %v367 = vpack.c.b16 %v359, %v358
      %376 = vmatprep.subr.bf16.mxu0 0
      %377 = vmatpush1.bf16.msra.mxu0 %v367
      %378 = vmatprep.subr.bf16.mxu0 0
      %379 = vmatpush1.bf16.msra.mxu0 %v366
      %380 = vmatprep.subr.bf16.mxu0 0
      %381 = vmatpush1.bf16.msra.mxu0 %v365
      %382 = vmatprep.subr.bf16.mxu0 0
      %383 = vmatpush1.bf16.msra.mxu0 %v364
      %384 = vmatprep.subr.bf16.mxu0 0
      %385 = vmatpush1.bf16.msra.mxu0 %v363
      %386 = vmatprep.subr.bf16.mxu0 0
      %387 = vmatpush1.bf16.msra.mxu0 %v362
      %388 = vmatprep.subr.bf16.mxu0 0
      %389 = vmatpush1.bf16.msra.mxu0 %v361
      %390 = vmatprep.subr.bf16.mxu0 0
      %391 = vmatpush1.bf16.msra.mxu0 %v360
      %392 = vmatprep.subr.bf16.mxu0 0
      %393 = vmatpush2.bf16.msra.mxu0 0
      %394 = vmatprep.subr.bf16.mxu0 0
      %395 = vmatpush2.bf16.msra.mxu0 0
      %396 = vmatprep.subr.bf16.mxu0 0
      %397 = vmatpush2.bf16.msra.mxu0 0
      %398 = vmatprep.subr.bf16.mxu0 0
      %399 = vmatpush2.bf16.msra.mxu0 0
      %400 = vmatprep.subr.bf16.mxu0 0
      %401 = vmatpush2.bf16.msra.mxu0 0
      %402 = vmatprep.subr.bf16.mxu0 0
      %403 = vmatpush2.bf16.msra.mxu0 0
      %404 = vmatprep.subr.bf16.mxu0 0
      %405 = vmatpush2.bf16.msra.mxu0 0
      %406 = vmatprep.subr.bf16.mxu0 0
      %407 = vmatpush2.bf16.msra.mxu0 0
      %408 = vmatprep.mubr.bf16.mxu0 0
      %409 = vmatmul.mubr.bf16.gmra.mxu0 %v326
      %v410 = vpop.f32.mrf.mxu0
      %v411 = vadd.f32 0.0, %v410
      %v412 = vpop.f32.mrf.mxu0
      %v413 = vpop.f32.mrf.mxu0
      %v414 = vadd.f32 0.0, %v413
      %v415 = vpop.f32.mrf.mxu0
      %416 = vdwg.mxu0
      %v417 = vld [vmem:[%s287] sm:$0xf]
      %v418 = vld [vmem:[%s287 + $0x4] sm:$0xf]
      %v419 = vld [vmem:[%s292] sm:$0xf]
      %v420 = vld [vmem:[%s4] sm:$0x1]
      %v422 = vlaneseq
      %v423 = vshrl.u32 %v422, 7
      %v424 = vsub.s32 0, %v423
      %v425 = vrot.slane %v420, %v424
      %v429 = vunpack.c.l.b16 %v417
      %v430 = vunpack.c.l.b16 %v418
      %v431 = vpack.c.b16 %v430, %v429
      %vm432 = vcmask 64512
      %v434 = vsel %vm432, %v431, 0
      %vm436 = vcmask 1043456
      %v438 = vsel %vm436, %v419, 0
      %440 = vmatprep.subr.bf16.mxu0 0
      %441 = vmatpush1.bf16.msra.mxu0 0
      %442 = vmatprep.subr.bf16.mxu0 0
      %443 = vmatpush1.bf16.msra.mxu0 0
      %444 = vmatprep.subr.bf16.mxu0 0
      %445 = vmatpush1.bf16.msra.mxu0 0
      %446 = vmatprep.subr.bf16.mxu0 0
      %447 = vmatpush1.bf16.msra.mxu0 0
      %448 = vmatprep.subr.bf16.mxu0 0
      %449 = vmatpush1.bf16.msra.mxu0 0
      %450 = vmatprep.subr.bf16.mxu0 0
      %451 = vmatpush1.bf16.msra.mxu0 0
      %452 = vmatprep.subr.bf16.mxu0 0
      %453 = vmatpush1.bf16.msra.mxu0 0
      %454 = vmatprep.subr.bf16.mxu0 0
      %455 = vmatpush1.bf16.msra.mxu0 %v438
      %456 = vmatprep.subr.bf16.mxu0 0
      %457 = vmatpush2.bf16.msra.mxu0 0
      %458 = vmatprep.subr.bf16.mxu0 0
      %459 = vmatpush2.bf16.msra.mxu0 0
      %460 = vmatprep.subr.bf16.mxu0 0
      %461 = vmatpush2.bf16.msra.mxu0 0
      %462 = vmatprep.subr.bf16.mxu0 0
      %463 = vmatpush2.bf16.msra.mxu0 0
      %464 = vmatprep.subr.bf16.mxu0 0
      %465 = vmatpush2.bf16.msra.mxu0 0
      %466 = vmatprep.subr.bf16.mxu0 0
      %467 = vmatpush2.bf16.msra.mxu0 0
      %468 = vmatprep.subr.bf16.mxu0 0
      %469 = vmatpush2.bf16.msra.mxu0 0
      %470 = vmatprep.subr.bf16.mxu0 0
      %471 = vmatpush2.bf16.msra.mxu0 0
      %472 = vmatprep.mubr.bf16.mxu0 0
      %473 = vmatmul.mubr.bf16.gmra.mxu0 %v434
      %v474 = vpop.f32.mrf.mxu0
      %v475 = vadd.f32 %v425, %v474
      %v476 = vpop.f32.mrf.mxu0
      %v477 = vpop.f32.mrf.mxu0
      %v478 = vadd.f32 %v425, %v477
      %v479 = vpop.f32.mrf.mxu0
      %480 = vdwg.mxu0
      %481 = vadd.xlane.f32.xlu0 %v411
      %v482 = vpop.xlane.xlu0 %481
      %483 = vadd.xlane.f32.xlu0 %v414
      %v484 = vpop.xlane.xlu0 %483
      %v485 = vmul.f32 %v411, %v411
      %v486 = vmul.f32 %v414, %v414
      %487 = vadd.xlane.f32.xlu0 %v485
      %v488 = vpop.xlane.xlu0 %487
      %489 = vadd.xlane.f32.xlu0 %v486
      %v490 = vpop.xlane.xlu0 %489
      %491 = vadd.xlane.f32.xlu0 %v475
      %v492 = vpop.xlane.xlu0 %491
      %493 = vadd.xlane.f32.xlu0 %v478
      %v494 = vpop.xlane.xlu0 %493
      %v495 = vmul.f32 %v475, %v475
      %v496 = vmul.f32 %v478, %v478
      %497 = vadd.xlane.f32.xlu0 %v495
      %v498 = vpop.xlane.xlu0 %497
      %499 = vadd.xlane.f32.xlu0 %v496
      %v500 = vpop.xlane.xlu0 %499
      %vm501 = vcmask 7168
      %v502 = vsel %vm501, %v482, %v488
      %v503 = vsel %vm501, %v484, %v490
      %vm504 = vcmask 15360
      %v505 = vsel %vm504, %v502, %v492
      %v506 = vsel %vm504, %v503, %v494
      %vm507 = vcmask 23552
      %v508 = vsel %vm507, %v505, %v498
      %v509 = vsel %vm507, %v506, %v500
      %vm510 = vcmask 31744
      %511 = vst.msk [vmem:[%s301] sm:$0xff] %vm510, %v508
      %512 = vst.msk [vmem:[%s301 + $0x8] sm:$0xff] %vm510, %v509
      %s513 = smul.u32 2, %s20
      %p514 = scmp.lt.s32.totalorder %s21, 3
      %s515 = scalar_select %p514, %s21, 3
      %p516 = scmp.lt.s32.totalorder %s513, 1
      %s517 = scalar_select %p516, %s513, 1
      %s518 = smul.addr %s515, 2
      %s519 = sadd.s32 %s517, %s518
      %s520 = smul.addr %s519, 8
      %s521 = scalar_lea.vmem %s5, %s520
      // Predicated region
      $region41: #{tf_decoder_forward.2} parent=39 // pred_check
        %p522 = pneg %p170
      $region42: #{tf_decoder_forward.2} parent=39 // pred_check_branch
        %524 = sbr.rel (%p522) target = $region44
      $region43: #{tf_decoder_forward.2} parent=39 // pred_region
        %s525 = smul.u32 2, %s20
      $region44: #{tf_decoder_forward.2} parent=39 // pred_fallthru
        _
    $region40: #{tf_decoder_forward.2} parent=5 // pred_fallthru
      _
    %p526 = scmp.le.s32.totalorder 2, %s11
    // Predicated region
    $region45: #{tf_decoder_forward.2} parent=5 // pred_check
      %p527 = pneg %p526
    $region46: #{tf_decoder_forward.2} parent=5 // pred_check_branch
      %529 = sbr.rel (%p527) target = $region48
    $region47: #{tf_decoder_forward.2} parent=5 // pred_region
      %s530 = ssub.s32 %s11, 2
      // Predicated region
      $region49: #{tf_decoder_forward.2} parent=47 // pred_check
        %p531 = pneg %p176
      $region50: #{tf_decoder_forward.2} parent=47 // pred_check_branch
        %533 = sbr.rel (%p531) target = $region52
      $region51: #{tf_decoder_forward.2} parent=47 // pred_region
        %s534 = smul.u32 2, %s22
        %p535 = scmp.lt.s32.totalorder %s23, 3
        %s536 = scalar_select %p535, %s23, 3
        %p537 = scmp.lt.s32.totalorder %s534, 1
        %s538 = scalar_select %p537, %s534, 1
        %s539 = smul.addr %s536, 2
        %s540 = sadd.s32 %s538, %s539
        %s541 = smul.addr %s540, 8
        %s542 = scalar_lea.vmem %s5, %s541
      $region52: #{tf_decoder_forward.2} parent=47 // pred_fallthru
        _
    $region48: #{tf_decoder_forward.2} parent=5 // pred_fallthru
      _
  $region6: #{tf_decoder_forward.2} parent=0 // loop_footer
    %s15 = sadd.s32 1, %s11
  $region7: #{tf_decoder_forward.2} parent=0 // loop_footer_branch
    %10 = sbr.rel target = $region3
  $region8: #{tf_decoder_forward.2} parent=0 // loop_exit
    _

</llo_original>
